<compile_context>
chip_gen: v5e
topology: v5e:2x2
jax: 0.10.0
libtpu: 0.0.40
codegen_flags: <defaults>
</compile_context>

<pallas_src>
import numpy as np
import jax
import jax.numpy as jnp
from jax.experimental import pallas as pl
from jax.experimental.pallas import tpu as pltpu


# Architecture constants implied by the PyTorch module (36*10 flatten => L=50).
SEQ_LEN = 50
IN_CH = 3
WIN = 10                      # running_std_dev window
L_STD = SEQ_LEN - WIN         # 40
L1 = L_STD - 2                # 38 (conv1, k=3, valid)
L2 = L1 - 2                   # 36 (conv2, k=3, valid)
C1, C2 = 5, 10
H1, H2 = 256, 64

FLAT_IN = SEQ_LEN * IN_CH     # 150
F_SIG = L_STD * IN_CH         # 120
F_H1 = L1 * C1                # 190
F_H2 = L2 * C2                # 360


def convnet_kernel(x_ref, w1_ref, b1_ref, w2_ref, b2_ref,
                   wf1_ref, bf1_ref, wf2_ref, bf2_ref, wp_ref, bp_ref,
                   o_ref):
    xv = x_ref[...]                                       # (BT, 150)

    # ---- running std-dev (torch.std: unbiased ddof=1), two-pass ----
    # flat feature index is t*3 + c, so shifting the window by k time steps is
    # a (static) lane shift of 3k.
    win0 = xv[:, 0:F_SIG]
    s1 = win0
    for k in range(1, WIN):
        s1 = s1 + xv[:, 3 * k: 3 * k + F_SIG]
    mean = s1 * (1.0 / WIN)
    d = win0 - mean
    ss = d * d
    for k in range(1, WIN):
        d = xv[:, 3 * k: 3 * k + F_SIG] - mean
        ss = ss + d * d
    sig = jnp.sqrt(ss * (1.0 / (WIN - 1)))                # (BT, 120)

    # ---- conv1 (3->5, k=3, valid) + ReLU as banded dense MXU matmul ----
    h = jnp.maximum(
        jnp.dot(sig, w1_ref[...], preferred_element_type=jnp.float32)
        + b1_ref[...], 0.0)                               # (BT, 190)

    # ---- conv2 (5->10, k=3, valid) + ReLU as banded dense MXU matmul ----
    g = jnp.maximum(
        jnp.dot(h, w2_ref[...], preferred_element_type=jnp.float32)
        + b2_ref[...], 0.0)                               # (BT, 360)

    # ---- fc1: g is already the time-major/channel-minor flatten ----
    f1 = jnp.maximum(
        jnp.dot(g, wf1_ref[...], preferred_element_type=jnp.float32)
        + bf1_ref[...], 0.0)                              # (BT, 256)

    # ---- fc2 ----
    f2 = jnp.maximum(
        jnp.dot(f1, wf2_ref[...], preferred_element_type=jnp.float32)
        + bf2_ref[...], 0.0)                              # (BT, 64)

    # ---- classification head + log_softmax ----
    logits = (jnp.dot(f2, wp_ref[...], preferred_element_type=jnp.float32)
              + bp_ref[...])                              # (BT, n_out)
    m = jnp.max(logits, axis=1, keepdims=True)
    z = logits - m
    lse = jnp.log(jnp.sum(jnp.exp(z), axis=1, keepdims=True))
    o_ref[...] = z - lse


def _conv_banded(w, l_in, l_out):
    """Dense banded matrix for a valid 1D conv in the flat (t*Cin+i) layout.

    w: (Cout, Cin, K) PyTorch Conv1d weight.
    Returns big (l_in*Cin, l_out*Cout) with
        y[t*Cout + o] = sum_{k,i} x[(t+k)*Cin + i] * w[o, i, k].
    """
    c_out, c_in, ksz = w.shape
    t = jnp.arange(l_out)[:, None, None, None]
    k = jnp.arange(ksz)[None, :, None, None]
    i = jnp.arange(c_in)[None, None, :, None]
    o = jnp.arange(c_out)[None, None, None, :]
    shape = (l_out, ksz, c_in, c_out)
    rows = jnp.broadcast_to((t + k) * c_in + i, shape).reshape(-1)
    cols = jnp.broadcast_to(t * c_out + o, shape).reshape(-1)
    vals = jnp.broadcast_to(jnp.transpose(w, (2, 1, 0))[None], shape).reshape(-1)
    big = jnp.zeros((l_in * c_in, l_out * c_out), jnp.float32)
    return big.at[rows, cols].set(vals.astype(jnp.float32))


def convnet_forward(x, params, flag=False, b_tile=None):
    """x: (B, 50, 3) float32. flag=False -> pamap head (12), True -> robogame (4).

    b_tile: samples per grid step.  Default 256 (fills v6e/v7x MXU rows, 2x128
    for v5e); for tiny batches it falls back to the batch rounded up to 8.
    """
    B = x.shape[0]
    if b_tile is None:
        b_tile = 256 if B >= 256 else ((B + 7) // 8) * 8
    b_pad = ((B + b_tile - 1) // b_tile) * b_tile

    # ---- wrapper-side glue: lane-dense input + pre-transformed weights ----
    x_flat = x.reshape(B, FLAT_IN)
    if b_pad != B:
        x_flat = jnp.pad(x_flat, ((0, b_pad - B), (0, 0)))

    w1b = _conv_banded(params['w1'], L_STD, L1)           # (120, 190)
    w2b = _conv_banded(params['w2'], L1, L2)               # (190, 360)
    b1b = jnp.tile(params['b1'], L1)[None, :]               # (1, 190): b1[o] at t*5+o
    b2b = jnp.tile(params['b2'], L2)[None, :]               # (1, 360)
    wf1t = params['wf1'].T                                   # (360, 256), rows = t*10+c
    wf2t = params['wf2'].T                                   # (256, 64)
    if flag:
        wp, bp = params['wrobo'], params['brobo']
    else:
        wp, bp = params['wp'], params['bp']
    wpt = wp.T                                               # (64, n_out)
    n_out = wpt.shape[1]

    grid = (b_pad // b_tile,)

    # Advisory cost estimate for XLA scheduling.
    macs = (F_SIG * F_H1 + F_H1 * F_H2 + F_H2 * H1 + H1 * H2 + H2 * n_out)
    weight_elems = (F_SIG * F_H1 + F_H1 + F_H1 * F_H2 + F_H2
                    + F_H2 * H1 + H1 + H1 * H2 + H2 + H2 * n_out + n_out)
    cost = pl.CostEstimate(
        flops=2 * b_pad * macs + 4 * b_pad * WIN * F_SIG,
        transcendentals=b_pad * (F_SIG + n_out),
        bytes_accessed=4 * (b_pad * (FLAT_IN + n_out) + weight_elems))

    out = pl.pallas_call(
        convnet_kernel,
        out_shape=jax.ShapeDtypeStruct((b_pad, n_out), jnp.float32),
        grid=grid,
        in_specs=[
            pl.BlockSpec((b_tile, FLAT_IN), lambda b: (b, 0)),
            pl.BlockSpec((F_SIG, F_H1), lambda b: (0, 0)),
            pl.BlockSpec((1, F_H1), lambda b: (0, 0)),
            pl.BlockSpec((F_H1, F_H2), lambda b: (0, 0)),
            pl.BlockSpec((1, F_H2), lambda b: (0, 0)),
            pl.BlockSpec((F_H2, H1), lambda b: (0, 0)),
            pl.BlockSpec((1, H1), lambda b: (0, 0)),
            pl.BlockSpec((H1, H2), lambda b: (0, 0)),
            pl.BlockSpec((1, H2), lambda b: (0, 0)),
            pl.BlockSpec((H2, n_out), lambda b: (0, 0)),
            pl.BlockSpec((1, n_out), lambda b: (0, 0)),
        ],
        out_specs=pl.BlockSpec((b_tile, n_out), lambda b: (b, 0)),
        compiler_params=pltpu.CompilerParams(
            dimension_semantics=("parallel",)),
        cost_estimate=cost,
    )(x_flat, w1b, b1b, w2b, b2b,
      wf1t, params['bf1'][None, :],
      wf2t, params['bf2'][None, :],
      wpt, bp[None, :])
    return out[:B]


def init_params(key):
    """Deterministic synthetic init mimicking the module's xavier_uniform_ setup."""
    ks = jax.random.split(key, 12)
    g_relu = float(np.sqrt(2.0))    # nn.init.calculate_gain('relu')
    g_sig = 1.0                     # nn.init.calculate_gain('sigmoid')

    def xavier(k, shape, fan_in, fan_out, gain):
        bound = gain * np.sqrt(6.0 / (fan_in + fan_out))
        return jax.random.uniform(k, shape, jnp.float32, -bound, bound)

    def bias(k, shape, fan_in):
        bound = 1.0 / np.sqrt(fan_in)
        return jax.random.uniform(k, shape, jnp.float32, -bound, bound)

    return dict(
        w1=xavier(ks[0], (C1, IN_CH, 3), IN_CH * 3, C1 * 3, g_relu),
        b1=bias(ks[1], (C1,), IN_CH * 3),
        w2=xavier(ks[2], (C2, C1, 3), C1 * 3, C2 * 3, g_relu),
        b2=bias(ks[3], (C2,), C1 * 3),
        wf1=xavier(ks[4], (H1, L2 * C2), L2 * C2, H1, g_relu),
        bf1=bias(ks[5], (H1,), L2 * C2),
        wf2=xavier(ks[6], (H2, H1), H1, H2, g_relu),
        bf2=bias(ks[7], (H2,), H1),
        wp=xavier(ks[8], (12, H2), H2, 12, g_sig),
        bp=bias(ks[9], (12,), H2),
        wrobo=xavier(ks[10], (4, H2), H2, 4, g_sig),
        brobo=bias(ks[11], (4,), H2),
    )


def reference_forward(x, p, flag=False):
    """Pure-JAX reference replicating the PyTorch forward."""
    B, L, C = x.shape
    n = L - WIN
    wins = jnp.stack([x[:, j:j + WIN, :] for j in range(n)], axis=1)  # (B,n,10,C)
    std = jnp.std(wins, axis=2, ddof=1)                               # (B,n,C)
    sig = jnp.transpose(std, (0, 2, 1))                               # (B,C,n)
    h = jax.lax.conv_general_dilated(
        sig, p['w1'], (1,), 'VALID',
        dimension_numbers=('NCH', 'OIH', 'NCH')) + p['b1'][None, :, None]
    h = jnp.maximum(h, 0.0)
    g = jax.lax.conv_general_dilated(
        h, p['w2'], (1,), 'VALID',
        dimension_numbers=('NCH', 'OIH', 'NCH')) + p['b2'][None, :, None]
    g = jnp.maximum(g, 0.0)
    flat = jnp.transpose(g, (0, 2, 1)).reshape(B, L2 * C2)
    f1 = jnp.maximum(flat @ p['wf1'].T + p['bf1'], 0.0)
    f2 = jnp.maximum(f1 @ p['wf2'].T + p['bf2'], 0.0)
    if flag:
        logits = f2 @ p['wrobo'].T + p['brobo']
    else:
        logits = f2 @ p['wp'].T + p['bp']
    return jax.nn.log_softmax(logits, axis=1)


if __name__ == "__main__":
    key = jax.random.PRNGKey(0)
    pkey, xkey, xkey2 = jax.random.split(key, 3)
    params = init_params(pkey)

    # Small batch, pamap head (default path).
    x = jax.random.normal(xkey, (2, SEQ_LEN, IN_CH), jnp.float32)
    out = jax.block_until_ready(convnet_forward(x, params, flag=False))
    ref = reference_forward(x, params, flag=False)
    assert out.shape == (2, 12)
    np.testing.assert_allclose(np.asarray(out), np.asarray(ref),
                               rtol=2e-3, atol=2e-3)

    # Robogame head (n_out = 4).
    out_r = jax.block_until_ready(convnet_forward(x, params, flag=True))
    ref_r = reference_forward(x, params, flag=True)
    assert out_r.shape == (2, 4)
    np.testing.assert_allclose(np.asarray(out_r), np.asarray(ref_r),
                               rtol=2e-3, atol=2e-3)

    # Larger batch: exercises batch tiling (B_TILE=256, grid=2) and pad/slice.
    xb = jax.random.normal(xkey2, (300, SEQ_LEN, IN_CH), jnp.float32)
    outb = jax.block_until_ready(convnet_forward(xb, params, flag=False))
    refb = reference_forward(xb, params, flag=False)
    assert outb.shape == (300, 12)
    np.testing.assert_allclose(np.asarray(outb), np.asarray(refb),
                               rtol=2e-3, atol=2e-3)

    print("KERNEL_OK")
</pallas_src>

<mosaic_0001>
module attributes {stable_mosaic.version = 11 : i64} {
  func.func @convnet_kernel(%arg0: i32, %arg1: memref<8x150xf32, #tpu.memory_space<vmem>>, %arg2: memref<120x190xf32, #tpu.memory_space<vmem>>, %arg3: memref<1x190xf32, #tpu.memory_space<vmem>>, %arg4: memref<190x360xf32, #tpu.memory_space<vmem>>, %arg5: memref<1x360xf32, #tpu.memory_space<vmem>>, %arg6: memref<360x256xf32, #tpu.memory_space<vmem>>, %arg7: memref<1x256xf32, #tpu.memory_space<vmem>>, %arg8: memref<256x64xf32, #tpu.memory_space<vmem>>, %arg9: memref<1x64xf32, #tpu.memory_space<vmem>>, %arg10: memref<64x12xf32, #tpu.memory_space<vmem>>, %arg11: memref<1x12xf32, #tpu.memory_space<vmem>>, %arg12: memref<8x12xf32, #tpu.memory_space<vmem>>) attributes {dimension_semantics = [#tpu.dimension_semantics<parallel>], iteration_bounds = array<i64: 1>, scalar_prefetch = 0 : i64, scratch_operands = 0 : i64, tpu.core_type = #tpu.core_type<tc>, window_params = [{transform_indices = @transform_0, window_bounds = array<i64: 8, 150>}, {pipeline_mode = #tpu.pipeline_mode<synchronous>, transform_indices = @transform_1, window_bounds = array<i64: 120, 190>}, {pipeline_mode = #tpu.pipeline_mode<synchronous>, transform_indices = @transform_2, window_bounds = array<i64: 1, 190>}, {pipeline_mode = #tpu.pipeline_mode<synchronous>, transform_indices = @transform_3, window_bounds = array<i64: 190, 360>}, {pipeline_mode = #tpu.pipeline_mode<synchronous>, transform_indices = @transform_4, window_bounds = array<i64: 1, 360>}, {pipeline_mode = #tpu.pipeline_mode<synchronous>, transform_indices = @transform_5, window_bounds = array<i64: 360, 256>}, {pipeline_mode = #tpu.pipeline_mode<synchronous>, transform_indices = @transform_6, window_bounds = array<i64: 1, 256>}, {pipeline_mode = #tpu.pipeline_mode<synchronous>, transform_indices = @transform_7, window_bounds = array<i64: 256, 64>}, {pipeline_mode = #tpu.pipeline_mode<synchronous>, transform_indices = @transform_8, window_bounds = array<i64: 1, 64>}, {pipeline_mode = #tpu.pipeline_mode<synchronous>, transform_indices = @transform_9, window_bounds = array<i64: 64, 12>}, {pipeline_mode = #tpu.pipeline_mode<synchronous>, transform_indices = @transform_10, window_bounds = array<i64: 1, 12>}, {transform_indices = @transform_11, window_bounds = array<i64: 8, 12>}]} {
    %c0 = arith.constant 0 : index
    %c0_0 = arith.constant 0 : index
    %0 = vector.load %arg1[%c0, %c0_0] : memref<8x150xf32, #tpu.memory_space<vmem>>, vector<8x150xf32>
    %1 = vector.extract_strided_slice %0 {offsets = [0, 0], sizes = [8, 120], strides = [1, 1]} : vector<8x150xf32> to vector<8x120xf32>
    %2 = vector.extract_strided_slice %0 {offsets = [0, 3], sizes = [8, 120], strides = [1, 1]} : vector<8x150xf32> to vector<8x120xf32>
    %3 = arith.addf %1, %2 : vector<8x120xf32>
    %4 = vector.extract_strided_slice %0 {offsets = [0, 6], sizes = [8, 120], strides = [1, 1]} : vector<8x150xf32> to vector<8x120xf32>
    %5 = arith.addf %3, %4 : vector<8x120xf32>
    %6 = vector.extract_strided_slice %0 {offsets = [0, 9], sizes = [8, 120], strides = [1, 1]} : vector<8x150xf32> to vector<8x120xf32>
    %7 = arith.addf %5, %6 : vector<8x120xf32>
    %8 = vector.extract_strided_slice %0 {offsets = [0, 12], sizes = [8, 120], strides = [1, 1]} : vector<8x150xf32> to vector<8x120xf32>
    %9 = arith.addf %7, %8 : vector<8x120xf32>
    %10 = vector.extract_strided_slice %0 {offsets = [0, 15], sizes = [8, 120], strides = [1, 1]} : vector<8x150xf32> to vector<8x120xf32>
    %11 = arith.addf %9, %10 : vector<8x120xf32>
    %12 = vector.extract_strided_slice %0 {offsets = [0, 18], sizes = [8, 120], strides = [1, 1]} : vector<8x150xf32> to vector<8x120xf32>
    %13 = arith.addf %11, %12 : vector<8x120xf32>
    %14 = vector.extract_strided_slice %0 {offsets = [0, 21], sizes = [8, 120], strides = [1, 1]} : vector<8x150xf32> to vector<8x120xf32>
    %15 = arith.addf %13, %14 : vector<8x120xf32>
    %16 = vector.extract_strided_slice %0 {offsets = [0, 24], sizes = [8, 120], strides = [1, 1]} : vector<8x150xf32> to vector<8x120xf32>
    %17 = arith.addf %15, %16 : vector<8x120xf32>
    %18 = vector.extract_strided_slice %0 {offsets = [0, 27], sizes = [8, 120], strides = [1, 1]} : vector<8x150xf32> to vector<8x120xf32>
    %19 = arith.addf %17, %18 : vector<8x120xf32>
    %cst = arith.constant 1.000000e-01 : f32
    %20 = vector.broadcast %cst : f32 to vector<8x120xf32>
    %21 = arith.mulf %19, %20 : vector<8x120xf32>
    %22 = arith.subf %1, %21 : vector<8x120xf32>
    %23 = arith.mulf %22, %22 : vector<8x120xf32>
    %24 = vector.extract_strided_slice %0 {offsets = [0, 3], sizes = [8, 120], strides = [1, 1]} : vector<8x150xf32> to vector<8x120xf32>
    %25 = arith.subf %24, %21 : vector<8x120xf32>
    %26 = arith.mulf %25, %25 : vector<8x120xf32>
    %27 = arith.addf %23, %26 : vector<8x120xf32>
    %28 = vector.extract_strided_slice %0 {offsets = [0, 6], sizes = [8, 120], strides = [1, 1]} : vector<8x150xf32> to vector<8x120xf32>
    %29 = arith.subf %28, %21 : vector<8x120xf32>
    %30 = arith.mulf %29, %29 : vector<8x120xf32>
    %31 = arith.addf %27, %30 : vector<8x120xf32>
    %32 = vector.extract_strided_slice %0 {offsets = [0, 9], sizes = [8, 120], strides = [1, 1]} : vector<8x150xf32> to vector<8x120xf32>
    %33 = arith.subf %32, %21 : vector<8x120xf32>
    %34 = arith.mulf %33, %33 : vector<8x120xf32>
    %35 = arith.addf %31, %34 : vector<8x120xf32>
    %36 = vector.extract_strided_slice %0 {offsets = [0, 12], sizes = [8, 120], strides = [1, 1]} : vector<8x150xf32> to vector<8x120xf32>
    %37 = arith.subf %36, %21 : vector<8x120xf32>
    %38 = arith.mulf %37, %37 : vector<8x120xf32>
    %39 = arith.addf %35, %38 : vector<8x120xf32>
    %40 = vector.extract_strided_slice %0 {offsets = [0, 15], sizes = [8, 120], strides = [1, 1]} : vector<8x150xf32> to vector<8x120xf32>
    %41 = arith.subf %40, %21 : vector<8x120xf32>
    %42 = arith.mulf %41, %41 : vector<8x120xf32>
    %43 = arith.addf %39, %42 : vector<8x120xf32>
    %44 = vector.extract_strided_slice %0 {offsets = [0, 18], sizes = [8, 120], strides = [1, 1]} : vector<8x150xf32> to vector<8x120xf32>
    %45 = arith.subf %44, %21 : vector<8x120xf32>
    %46 = arith.mulf %45, %45 : vector<8x120xf32>
    %47 = arith.addf %43, %46 : vector<8x120xf32>
    %48 = vector.extract_strided_slice %0 {offsets = [0, 21], sizes = [8, 120], strides = [1, 1]} : vector<8x150xf32> to vector<8x120xf32>
    %49 = arith.subf %48, %21 : vector<8x120xf32>
    %50 = arith.mulf %49, %49 : vector<8x120xf32>
    %51 = arith.addf %47, %50 : vector<8x120xf32>
    %52 = vector.extract_strided_slice %0 {offsets = [0, 24], sizes = [8, 120], strides = [1, 1]} : vector<8x150xf32> to vector<8x120xf32>
    %53 = arith.subf %52, %21 : vector<8x120xf32>
    %54 = arith.mulf %53, %53 : vector<8x120xf32>
    %55 = arith.addf %51, %54 : vector<8x120xf32>
    %56 = vector.extract_strided_slice %0 {offsets = [0, 27], sizes = [8, 120], strides = [1, 1]} : vector<8x150xf32> to vector<8x120xf32>
    %57 = arith.subf %56, %21 : vector<8x120xf32>
    %58 = arith.mulf %57, %57 : vector<8x120xf32>
    %59 = arith.addf %55, %58 : vector<8x120xf32>
    %cst_1 = arith.constant 0.111111112 : f32
    %60 = vector.broadcast %cst_1 : f32 to vector<8x120xf32>
    %61 = arith.mulf %59, %60 : vector<8x120xf32>
    %62 = math.sqrt %61 : vector<8x120xf32>
    %c0_2 = arith.constant 0 : index
    %c0_3 = arith.constant 0 : index
    %63 = vector.load %arg2[%c0_2, %c0_3] : memref<120x190xf32, #tpu.memory_space<vmem>>, vector<120x190xf32>
    %cst_4 = arith.constant dense<0.000000e+00> : vector<8x190xf32>
    %64 = tpu.matmul %62, %63, %cst_4 {dimension_numbers = #tpu.dot_dimension_numbers<[1], [0], [0], [1], [0, 0, 1, 1], [], []>} : vector<8x120xf32>, vector<120x190xf32>, vector<8x190xf32> -> vector<8x190xf32>
    %c0_5 = arith.constant 0 : index
    %c0_6 = arith.constant 0 : index
    %65 = vector.load %arg3[%c0_5, %c0_6] : memref<1x190xf32, #tpu.memory_space<vmem>>, vector<1x190xf32>
    %66 = vector.broadcast %65 : vector<1x190xf32> to vector<8x190xf32>
    %67 = arith.addf %64, %66 : vector<8x190xf32>
    %cst_7 = arith.constant 0.000000e+00 : f32
    %68 = vector.broadcast %cst_7 : f32 to vector<8x190xf32>
    %69 = arith.maximumf %67, %68 : vector<8x190xf32>
    %c0_8 = arith.constant 0 : index
    %c0_9 = arith.constant 0 : index
    %70 = vector.load %arg4[%c0_8, %c0_9] : memref<190x360xf32, #tpu.memory_space<vmem>>, vector<190x360xf32>
    %cst_10 = arith.constant dense<0.000000e+00> : vector<8x360xf32>
    %71 = tpu.matmul %69, %70, %cst_10 {dimension_numbers = #tpu.dot_dimension_numbers<[1], [0], [0], [1], [0, 0, 1, 1], [], []>} : vector<8x190xf32>, vector<190x360xf32>, vector<8x360xf32> -> vector<8x360xf32>
    %c0_11 = arith.constant 0 : index
    %c0_12 = arith.constant 0 : index
    %72 = vector.load %arg5[%c0_11, %c0_12] : memref<1x360xf32, #tpu.memory_space<vmem>>, vector<1x360xf32>
    %73 = vector.broadcast %72 : vector<1x360xf32> to vector<8x360xf32>
    %74 = arith.addf %71, %73 : vector<8x360xf32>
    %cst_13 = arith.constant 0.000000e+00 : f32
    %75 = vector.broadcast %cst_13 : f32 to vector<8x360xf32>
    %76 = arith.maximumf %74, %75 : vector<8x360xf32>
    %c0_14 = arith.constant 0 : index
    %c0_15 = arith.constant 0 : index
    %77 = vector.load %arg6[%c0_14, %c0_15] : memref<360x256xf32, #tpu.memory_space<vmem>>, vector<360x256xf32>
    %cst_16 = arith.constant dense<0.000000e+00> : vector<8x256xf32>
    %78 = tpu.matmul %76, %77, %cst_16 {dimension_numbers = #tpu.dot_dimension_numbers<[1], [0], [0], [1], [0, 0, 1, 1], [], []>} : vector<8x360xf32>, vector<360x256xf32>, vector<8x256xf32> -> vector<8x256xf32>
    %c0_17 = arith.constant 0 : index
    %c0_18 = arith.constant 0 : index
    %79 = vector.load %arg7[%c0_17, %c0_18] : memref<1x256xf32, #tpu.memory_space<vmem>>, vector<1x256xf32>
    %80 = vector.broadcast %79 : vector<1x256xf32> to vector<8x256xf32>
    %81 = arith.addf %78, %80 : vector<8x256xf32>
    %cst_19 = arith.constant 0.000000e+00 : f32
    %82 = vector.broadcast %cst_19 : f32 to vector<8x256xf32>
    %83 = arith.maximumf %81, %82 : vector<8x256xf32>
    %c0_20 = arith.constant 0 : index
    %c0_21 = arith.constant 0 : index
    %84 = vector.load %arg8[%c0_20, %c0_21] : memref<256x64xf32, #tpu.memory_space<vmem>>, vector<256x64xf32>
    %cst_22 = arith.constant dense<0.000000e+00> : vector<8x64xf32>
    %85 = tpu.matmul %83, %84, %cst_22 {dimension_numbers = #tpu.dot_dimension_numbers<[1], [0], [0], [1], [0, 0, 1, 1], [], []>} : vector<8x256xf32>, vector<256x64xf32>, vector<8x64xf32> -> vector<8x64xf32>
    %c0_23 = arith.constant 0 : index
    %c0_24 = arith.constant 0 : index
    %86 = vector.load %arg9[%c0_23, %c0_24] : memref<1x64xf32, #tpu.memory_space<vmem>>, vector<1x64xf32>
    %87 = vector.broadcast %86 : vector<1x64xf32> to vector<8x64xf32>
    %88 = arith.addf %85, %87 : vector<8x64xf32>
    %cst_25 = arith.constant 0.000000e+00 : f32
    %89 = vector.broadcast %cst_25 : f32 to vector<8x64xf32>
    %90 = arith.maximumf %88, %89 : vector<8x64xf32>
    %c0_26 = arith.constant 0 : index
    %c0_27 = arith.constant 0 : index
    %91 = vector.load %arg10[%c0_26, %c0_27] : memref<64x12xf32, #tpu.memory_space<vmem>>, vector<64x12xf32>
    %cst_28 = arith.constant dense<0.000000e+00> : vector<8x12xf32>
    %92 = tpu.matmul %90, %91, %cst_28 {dimension_numbers = #tpu.dot_dimension_numbers<[1], [0], [0], [1], [0, 0, 1, 1], [], []>} : vector<8x64xf32>, vector<64x12xf32>, vector<8x12xf32> -> vector<8x12xf32>
    %c0_29 = arith.constant 0 : index
    %c0_30 = arith.constant 0 : index
    %93 = vector.load %arg11[%c0_29, %c0_30] : memref<1x12xf32, #tpu.memory_space<vmem>>, vector<1x12xf32>
    %94 = vector.broadcast %93 : vector<1x12xf32> to vector<8x12xf32>
    %95 = arith.addf %92, %94 : vector<8x12xf32>
    %cst_31 = arith.constant dense<0xFF800000> : vector<8xf32>
    %96 = vector.multi_reduction <maximumf>, %95, %cst_31 [1] : vector<8x12xf32> to vector<8xf32>
    %97 = vector.shape_cast %96 : vector<8xf32> to vector<8x1xf32>
    %98 = vector.broadcast %97 : vector<8x1xf32> to vector<8x12xf32>
    %99 = arith.subf %95, %98 : vector<8x12xf32>
    %100 = math.exp %99 : vector<8x12xf32>
    %cst_32 = arith.constant dense<0.000000e+00> : vector<8xf32>
    %101 = vector.multi_reduction <add>, %100, %cst_32 [1] : vector<8x12xf32> to vector<8xf32>
    %102 = vector.shape_cast %101 : vector<8xf32> to vector<8x1xf32>
    %103 = math.log %102 : vector<8x1xf32>
    %104 = vector.broadcast %103 : vector<8x1xf32> to vector<8x12xf32>
    %105 = arith.subf %99, %104 : vector<8x12xf32>
    %c0_33 = arith.constant 0 : index
    %c0_34 = arith.constant 0 : index
    %106 = vector.load %arg12[%c0_33, %c0_34] : memref<8x12xf32, #tpu.memory_space<vmem>>, vector<8x12xf32>
    tpu.vector_store %arg12[%c0_33, %c0_34], %105 {strides = array<i32>} : memref<8x12xf32, #tpu.memory_space<vmem>>, vector<8x12xf32>,
    return
  }
  func.func @transform_0(%arg0: i32) -> (i32, i32) {
    %c0_i32 = arith.constant 0 : i32
    %c0_i32_0 = arith.constant 0 : i32
    return %arg0, %c0_i32 : i32, i32
  }
  func.func @transform_1(%arg0: i32) -> (i32, i32) {
    %c0_i32 = arith.constant 0 : i32
    %c0_i32_0 = arith.constant 0 : i32
    %c0_i32_1 = arith.constant 0 : i32
    return %c0_i32, %c0_i32_0 : i32, i32
  }
  func.func @transform_2(%arg0: i32) -> (i32, i32) {
    %c0_i32 = arith.constant 0 : i32
    %c0_i32_0 = arith.constant 0 : i32
    %c0_i32_1 = arith.constant 0 : i32
    return %c0_i32, %c0_i32_0 : i32, i32
  }
  func.func @transform_3(%arg0: i32) -> (i32, i32) {
    %c0_i32 = arith.constant 0 : i32
    %c0_i32_0 = arith.constant 0 : i32
    %c0_i32_1 = arith.constant 0 : i32
    return %c0_i32, %c0_i32_0 : i32, i32
  }
  func.func @transform_4(%arg0: i32) -> (i32, i32) {
    %c0_i32 = arith.constant 0 : i32
    %c0_i32_0 = arith.constant 0 : i32
    %c0_i32_1 = arith.constant 0 : i32
    return %c0_i32, %c0_i32_0 : i32, i32
  }
  func.func @transform_5(%arg0: i32) -> (i32, i32) {
    %c0_i32 = arith.constant 0 : i32
    %c0_i32_0 = arith.constant 0 : i32
    %c0_i32_1 = arith.constant 0 : i32
    return %c0_i32, %c0_i32_0 : i32, i32
  }
  func.func @transform_6(%arg0: i32) -> (i32, i32) {
    %c0_i32 = arith.constant 0 : i32
    %c0_i32_0 = arith.constant 0 : i32
    %c0_i32_1 = arith.constant 0 : i32
    return %c0_i32, %c0_i32_0 : i32, i32
  }
  func.func @transform_7(%arg0: i32) -> (i32, i32) {
    %c0_i32 = arith.constant 0 : i32
    %c0_i32_0 = arith.constant 0 : i32
    %c0_i32_1 = arith.constant 0 : i32
    return %c0_i32, %c0_i32_0 : i32, i32
  }
  func.func @transform_8(%arg0: i32) -> (i32, i32) {
    %c0_i32 = arith.constant 0 : i32
    %c0_i32_0 = arith.constant 0 : i32
    %c0_i32_1 = arith.constant 0 : i32
    return %c0_i32, %c0_i32_0 : i32, i32
  }
  func.func @transform_9(%arg0: i32) -> (i32, i32) {
    %c0_i32 = arith.constant 0 : i32
    %c0_i32_0 = arith.constant 0 : i32
    %c0_i32_1 = arith.constant 0 : i32
    return %c0_i32, %c0_i32_0 : i32, i32
  }
  func.func @transform_10(%arg0: i32) -> (i32, i32) {
    %c0_i32 = arith.constant 0 : i32
    %c0_i32_0 = arith.constant 0 : i32
    %c0_i32_1 = arith.constant 0 : i32
    return %c0_i32, %c0_i32_0 : i32, i32
  }
  func.func @transform_11(%arg0: i32) -> (i32, i32) {
    %c0_i32 = arith.constant 0 : i32
    %c0_i32_0 = arith.constant 0 : i32
    return %arg0, %c0_i32 : i32, i32
  }
}

</mosaic_0001>

<llo_original>
// kernel: tpu_custom_call.1
$region0: #{tpu_custom_call.1}
  #allocation0 [shape = 'u32[]', space=smem, size = 0x4, offset = 0x4, fixed_abs, tag = 'smem constant byte address 0x4 - core index']
  #allocation1 [shape = 'u32[72,128]{1,0:T(1,128)}', space=vmem, size = 0x9000, scoped, tag = 'internal scratch']
  %s0 = inlined_call_operand.vmem [shape: f32[8,150], index: 0, kind: input, shape index: {}]
  %s1 = inlined_call_operand.vmem [shape: f32[120,190], index: 1, kind: input, shape index: {}]
  %s2 = inlined_call_operand.vmem [shape: f32[1,190], index: 2, kind: input, shape index: {}]
  %s3 = inlined_call_operand.hbm [shape: f32[190,360], index: 3, kind: input, shape index: {}]
  %s4 = inlined_call_operand.vmem [shape: f32[1,360], index: 4, kind: input, shape index: {}]
  %s5 = inlined_call_operand.vmem [shape: f32[360,256], index: 5, kind: input, shape index: {}]
  %s6 = inlined_call_operand.vmem [shape: f32[1,256], index: 6, kind: input, shape index: {}]
  %s7 = inlined_call_operand.vmem [shape: f32[256,64], index: 7, kind: input, shape index: {}]
  %s8 = inlined_call_operand.vmem [shape: f32[1,64], index: 8, kind: input, shape index: {}]
  %s9 = inlined_call_operand.vmem [shape: f32[64,12], index: 9, kind: input, shape index: {}]
  %s10 = inlined_call_operand.vmem [shape: f32[1,12], index: 10, kind: input, shape index: {}]
  %s11 = inlined_call_operand.hbm [shape: f32[8,12], index: 11, kind: output, shape index: {}]
  %s12 = sld [smem:[#allocation0]]
  $region58: #{tpu_custom_call.1} parent=0
    _
  %s14 = ssub.s32 1, %s12
  %s15 = scalar_select 0, %s14, %s12
  $region1: #{tpu_custom_call.1} parent=0
    #allocation2 [shape = 'u8[294912]{0}', space=vmem, size = 0x48000, scoped, tag = 'input window, operand 3, single buffered']
    #allocation3 [shape = 's32[1]{0}', space=sflag, size = 0x4, scoped, tag = 'scoped memory for tpu_custom_call.1']
    #allocation4 [shape = 's32[1]{0}', space=sflag, size = 0x4, scoped, tag = 'scoped memory for tpu_custom_call.1']
    #allocation5 [shape = 'u8[4096]{0}', space=vmem, size = 0x1000, scoped, tag = 'output window, operand 0, single buffered']
    %16 = vsyncpa [#allocation3], 0
    %17 = vsyncpa [#allocation4], 0
    // Predicated region
    $region2: #{tpu_custom_call.1} parent=1 // pred_check
      _
    $region3: #{tpu_custom_call.1} parent=1 // pred_check_branch
      %19 = sbr.rel (0) target = $region5
    $region4: #{tpu_custom_call.1} parent=1 // pred_region
      _
    $region5: #{tpu_custom_call.1} parent=1 // pred_fallthru
      _
    // Predicated region
    $region6: #{tpu_custom_call.1} parent=1 // pred_check
      _
    $region7: #{tpu_custom_call.1} parent=1 // pred_check_branch
      %21 = sbr.rel (0) target = $region9
    $region8: #{tpu_custom_call.1} parent=1 // pred_region
      _
    $region9: #{tpu_custom_call.1} parent=1 // pred_fallthru
      _
    // Predicated region
    $region10: #{tpu_custom_call.1} parent=1 // pred_check
      _
    $region11: #{tpu_custom_call.1} parent=1 // pred_check_branch
      %23 = sbr.rel (0) target = $region13
    $region12: #{tpu_custom_call.1} parent=1 // pred_region
      _
    $region13: #{tpu_custom_call.1} parent=1 // pred_fallthru
      _
    // Predicated region
    $region14: #{tpu_custom_call.1} parent=1 // pred_check
      _
    $region15: #{tpu_custom_call.1} parent=1 // pred_check_branch
      %25 = sbr.rel (0) target = $region17
    $region16: #{tpu_custom_call.1} parent=1 // pred_region
      %27 = vsyncadd [#allocation3], 0
      %s28 = sshll.u32 %s3, 4
      %s29 = int_to_ptr.hbm [resolvable:$true] %s28
      %s30 = sshll.u32 [#allocation2], 4
      %s31 = int_to_ptr.vmem [resolvable:$true] %s30
      %36 = dma.hbm_to_vmem [thread:$0]  %s29, 9216, %s31, [#allocation3], 384, 384, 24
    $region17: #{tpu_custom_call.1} parent=1 // pred_fallthru
      _
    // Predicated region
    $region18: #{tpu_custom_call.1} parent=1 // pred_check
      _
    $region19: #{tpu_custom_call.1} parent=1 // pred_check_branch
      %38 = sbr.rel (0) target = $region21
    $region20: #{tpu_custom_call.1} parent=1 // pred_region
      _
    $region21: #{tpu_custom_call.1} parent=1 // pred_fallthru
      _
    // Predicated region
    $region22: #{tpu_custom_call.1} parent=1 // pred_check
      _
    $region23: #{tpu_custom_call.1} parent=1 // pred_check_branch
      %40 = sbr.rel (0) target = $region25
    $region24: #{tpu_custom_call.1} parent=1 // pred_region
      _
    $region25: #{tpu_custom_call.1} parent=1 // pred_fallthru
      _
    // Predicated region
    $region26: #{tpu_custom_call.1} parent=1 // pred_check
      _
    $region27: #{tpu_custom_call.1} parent=1 // pred_check_branch
      %42 = sbr.rel (0) target = $region29
    $region28: #{tpu_custom_call.1} parent=1 // pred_region
      _
    $region29: #{tpu_custom_call.1} parent=1 // pred_fallthru
      _
    // Predicated region
    $region30: #{tpu_custom_call.1} parent=1 // pred_check
      _
    $region31: #{tpu_custom_call.1} parent=1 // pred_check_branch
      %44 = sbr.rel (0) target = $region33
    $region32: #{tpu_custom_call.1} parent=1 // pred_region
      _
    $region33: #{tpu_custom_call.1} parent=1 // pred_fallthru
      _
    // Predicated region
    $region34: #{tpu_custom_call.1} parent=1 // pred_check
      _
    $region35: #{tpu_custom_call.1} parent=1 // pred_check_branch
      %46 = sbr.rel (0) target = $region37
    $region36: #{tpu_custom_call.1} parent=1 // pred_region
      _
    $region37: #{tpu_custom_call.1} parent=1 // pred_fallthru
      _
    // Predicated region
    $region38: #{tpu_custom_call.1} parent=1 // pred_check
      _
    $region39: #{tpu_custom_call.1} parent=1 // pred_check_branch
      %48 = sbr.rel (0) target = $region41
    $region40: #{tpu_custom_call.1} parent=1 // pred_region
      _
    $region41: #{tpu_custom_call.1} parent=1 // pred_fallthru
      _
    // Predicated region
    $region42: #{tpu_custom_call.1} parent=1 // pred_check
      _
    $region43: #{tpu_custom_call.1} parent=1 // pred_check_branch
      %50 = sbr.rel (0) target = $region45
    $region44: #{tpu_custom_call.1} parent=1 // pred_region
      _
    $region45: #{tpu_custom_call.1} parent=1 // pred_fallthru
      _
    // Predicated region
    $region46: #{tpu_custom_call.1} parent=1 // pred_check
      _
    $region47: #{tpu_custom_call.1} parent=1 // pred_check_branch
      %52 = sbr.rel (0) target = $region49
    $region48: #{tpu_custom_call.1} parent=1 // pred_region
      %54 = dma.done [#allocation3], 9216
    $region49: #{tpu_custom_call.1} parent=1 // pred_fallthru
      _
    %v55 = vld [vmem:[%s0] sm:$0xff]
    %v56 = vld [vmem:[%s0 + $0x8] sm:$0xff]
    %58 = vrot.lane.b32.xlu0 %v55, 125
    %v59 = vpop.permute.xlu0 %58
    %v61 = vadd.f32 %v55, %v59
    %62 = vrot.lane.b32.xlu0 %v55, 122
    %v63 = vpop.permute.xlu0 %62
    %v65 = vadd.f32 %v61, %v63
    %67 = vrot.lane.b32.xlu0 %v55, 119
    %v68 = vpop.permute.xlu0 %67
    %69 = vrot.lane.b32.xlu0 %v56, 119
    %v70 = vpop.permute.xlu0 %69
    %vm71 = vcmask 973824
    %v72 = vsel %vm71, %v68, %v70
    %v74 = vadd.f32 %v65, %v72
    %75 = vrot.lane.b32.xlu0 %v55, 116
    %v76 = vpop.permute.xlu0 %75
    %77 = vrot.lane.b32.xlu0 %v56, 116
    %v78 = vpop.permute.xlu0 %77
    %vm79 = vcmask 949248
    %v80 = vsel %vm79, %v76, %v78
    %v82 = vadd.f32 %v74, %v80
    %83 = vrot.lane.b32.xlu0 %v55, 113
    %v84 = vpop.permute.xlu0 %83
    %85 = vrot.lane.b32.xlu0 %v56, 113
    %v86 = vpop.permute.xlu0 %85
    %vm87 = vcmask 924672
    %v88 = vsel %vm87, %v84, %v86
    %v90 = vadd.f32 %v82, %v88
    %91 = vrot.lane.b32.xlu0 %v55, 110
    %v92 = vpop.permute.xlu0 %91
    %93 = vrot.lane.b32.xlu0 %v56, 110
    %v94 = vpop.permute.xlu0 %93
    %vm95 = vcmask 900096
    %v96 = vsel %vm95, %v92, %v94
    %v98 = vadd.f32 %v90, %v96
    %99 = vrot.lane.b32.xlu0 %v55, 107
    %v100 = vpop.permute.xlu0 %99
    %101 = vrot.lane.b32.xlu0 %v56, 107
    %v102 = vpop.permute.xlu0 %101
    %vm103 = vcmask 875520
    %v104 = vsel %vm103, %v100, %v102
    %v106 = vadd.f32 %v98, %v104
    %107 = vrot.lane.b32.xlu0 %v55, 104
    %v108 = vpop.permute.xlu0 %107
    %109 = vrot.lane.b32.xlu0 %v56, 104
    %v110 = vpop.permute.xlu0 %109
    %vm111 = vcmask 850944
    %v112 = vsel %vm111, %v108, %v110
    %v114 = vadd.f32 %v106, %v112
    %115 = vrot.lane.b32.xlu0 %v55, 101
    %v116 = vpop.permute.xlu0 %115
    %117 = vrot.lane.b32.xlu0 %v56, 101
    %v118 = vpop.permute.xlu0 %117
    %vm119 = vcmask 826368
    %v120 = vsel %vm119, %v116, %v118
    %v122 = vadd.f32 %v114, %v120
    %v123 = vmul.f32 %v122, 0.1
    %v124 = vsub.f32 %v55, %v123
    %v125 = vmul.f32 %v124, %v124
    %127 = vrot.lane.b32.xlu0 %v123, 3
    %v128 = vpop.permute.xlu0 %127
    %v130 = vsub.f32 %v55, %v128
    %v131 = vmul.f32 %v130, %v130
    %133 = vrot.lane.b32.xlu0 %v131, 125
    %v134 = vpop.permute.xlu0 %133
    %v136 = vadd.f32 %v125, %v134
    %137 = vrot.lane.b32.xlu0 %v123, 6
    %v138 = vpop.permute.xlu0 %137
    %v140 = vsub.f32 %v55, %v138
    %v141 = vmul.f32 %v140, %v140
    %143 = vrot.lane.b32.xlu0 %v141, 122
    %v144 = vpop.permute.xlu0 %143
    %v146 = vadd.f32 %v136, %v144
    %147 = vrot.lane.b32.xlu0 %v123, 9
    %v148 = vpop.permute.xlu0 %147
    %v150 = vsub.f32 %v55, %v148
    %v151 = vsub.f32 %v56, %v148
    %v152 = vmul.f32 %v150, %v150
    %v153 = vmul.f32 %v151, %v151
    %156 = vrot.lane.b32.xlu0 %v152, 119
    %v157 = vpop.permute.xlu0 %156
    %158 = vrot.lane.b32.xlu0 %v153, 119
    %v159 = vpop.permute.xlu0 %158
    %v160 = vsel %vm71, %v157, %v159
    %v162 = vadd.f32 %v146, %v160
    %163 = vrot.lane.b32.xlu0 %v123, 12
    %v164 = vpop.permute.xlu0 %163
    %v166 = vsub.f32 %v55, %v164
    %v167 = vsub.f32 %v56, %v164
    %v168 = vmul.f32 %v166, %v166
    %v169 = vmul.f32 %v167, %v167
    %172 = vrot.lane.b32.xlu0 %v168, 116
    %v173 = vpop.permute.xlu0 %172
    %174 = vrot.lane.b32.xlu0 %v169, 116
    %v175 = vpop.permute.xlu0 %174
    %v176 = vsel %vm79, %v173, %v175
    %v178 = vadd.f32 %v162, %v176
    %179 = vrot.lane.b32.xlu0 %v123, 15
    %v180 = vpop.permute.xlu0 %179
    %v182 = vsub.f32 %v55, %v180
    %v183 = vsub.f32 %v56, %v180
    %v184 = vmul.f32 %v182, %v182
    %v185 = vmul.f32 %v183, %v183
    %188 = vrot.lane.b32.xlu0 %v184, 113
    %v189 = vpop.permute.xlu0 %188
    %190 = vrot.lane.b32.xlu0 %v185, 113
    %v191 = vpop.permute.xlu0 %190
    %v192 = vsel %vm87, %v189, %v191
    %v194 = vadd.f32 %v178, %v192
    %195 = vrot.lane.b32.xlu0 %v123, 18
    %v196 = vpop.permute.xlu0 %195
    %v198 = vsub.f32 %v55, %v196
    %v199 = vsub.f32 %v56, %v196
    %v200 = vmul.f32 %v198, %v198
    %v201 = vmul.f32 %v199, %v199
    %204 = vrot.lane.b32.xlu0 %v200, 110
    %v205 = vpop.permute.xlu0 %204
    %206 = vrot.lane.b32.xlu0 %v201, 110
    %v207 = vpop.permute.xlu0 %206
    %v208 = vsel %vm95, %v205, %v207
    %v210 = vadd.f32 %v194, %v208
    %211 = vrot.lane.b32.xlu0 %v123, 21
    %v212 = vpop.permute.xlu0 %211
    %v214 = vsub.f32 %v55, %v212
    %v215 = vsub.f32 %v56, %v212
    %v216 = vmul.f32 %v214, %v214
    %v217 = vmul.f32 %v215, %v215
    %220 = vrot.lane.b32.xlu0 %v216, 107
    %v221 = vpop.permute.xlu0 %220
    %222 = vrot.lane.b32.xlu0 %v217, 107
    %v223 = vpop.permute.xlu0 %222
    %v224 = vsel %vm103, %v221, %v223
    %v226 = vadd.f32 %v210, %v224
    %227 = vrot.lane.b32.xlu0 %v123, 24
    %v228 = vpop.permute.xlu0 %227
    %v230 = vsub.f32 %v55, %v228
    %v231 = vsub.f32 %v56, %v228
    %v232 = vmul.f32 %v230, %v230
    %v233 = vmul.f32 %v231, %v231
    %236 = vrot.lane.b32.xlu0 %v232, 104
    %v237 = vpop.permute.xlu0 %236
    %238 = vrot.lane.b32.xlu0 %v233, 104
    %v239 = vpop.permute.xlu0 %238
    %v240 = vsel %vm111, %v237, %v239
    %v242 = vadd.f32 %v226, %v240
    %243 = vrot.lane.b32.xlu0 %v123, 27
    %v244 = vpop.permute.xlu0 %243
    %v246 = vsub.f32 %v55, %v244
    %v247 = vsub.f32 %v56, %v244
    %v248 = vmul.f32 %v246, %v246
    %v249 = vmul.f32 %v247, %v247
    %252 = vrot.lane.b32.xlu0 %v248, 101
    %v253 = vpop.permute.xlu0 %252
    %254 = vrot.lane.b32.xlu0 %v249, 101
    %v255 = vpop.permute.xlu0 %254
    %v256 = vsel %vm119, %v253, %v255
    %v258 = vadd.f32 %v242, %v256
    %v259 = vmul.f32 %v258, 0.11111111
    %v260 = vrsqrt.pop %v259
    %v261 = vmul.f32 %v260, %v259
    %v262 = vmul.f32 %v261, %v260
    %v263 = vmul.f32 0.5, %v262
    %v264 = vsub.f32 1.5, %v263
    %v265 = vmul.f32 %v260, %v264
    %v266 = vmul.f32 %v259, %v265
    %vm267 = vcmp.eq.f32.partialorder %v259, inf
    %v268 = vsel %vm267, %v259, %v266
    %vm269 = vcmp.eq.f32.partialorder %v259, 0.0
    %v270 = vand.u32 %v259, 2147483648
    %v271 = vsel %vm269, %v270, %v268
    %v272 = vld [vmem:[%s1] sm:$0xff]
    %v273 = vld [vmem:[%s1 + $0x8] sm:$0xff]
    %v274 = vld [vmem:[%s1 + $0x10] sm:$0xff]
    %v275 = vld [vmem:[%s1 + $0x18] sm:$0xff]
    %v276 = vld [vmem:[%s1 + $0x20] sm:$0xff]
    %v277 = vld [vmem:[%s1 + $0x28] sm:$0xff]
    %v278 = vld [vmem:[%s1 + $0x30] sm:$0xff]
    %v279 = vld [vmem:[%s1 + $0x38] sm:$0xff]
    %v280 = vld [vmem:[%s1 + $0x40] sm:$0xff]
    %v281 = vld [vmem:[%s1 + $0x48] sm:$0xff]
    %v282 = vld [vmem:[%s1 + $0x50] sm:$0xff]
    %v283 = vld [vmem:[%s1 + $0x58] sm:$0xff]
    %v284 = vld [vmem:[%s1 + $0x60] sm:$0xff]
    %v285 = vld [vmem:[%s1 + $0x68] sm:$0xff]
    %v286 = vld [vmem:[%s1 + $0x70] sm:$0xff]
    %v287 = vld [vmem:[%s1 + $0x78] sm:$0xff]
    %v288 = vld [vmem:[%s1 + $0x80] sm:$0xff]
    %v289 = vld [vmem:[%s1 + $0x88] sm:$0xff]
    %v290 = vld [vmem:[%s1 + $0x90] sm:$0xff]
    %v291 = vld [vmem:[%s1 + $0x98] sm:$0xff]
    %v292 = vld [vmem:[%s1 + $0xa0] sm:$0xff]
    %v293 = vld [vmem:[%s1 + $0xa8] sm:$0xff]
    %v294 = vld [vmem:[%s1 + $0xb0] sm:$0xff]
    %v295 = vld [vmem:[%s1 + $0xb8] sm:$0xff]
    %v296 = vld [vmem:[%s1 + $0xc0] sm:$0xff]
    %v297 = vld [vmem:[%s1 + $0xc8] sm:$0xff]
    %v298 = vld [vmem:[%s1 + $0xd0] sm:$0xff]
    %v299 = vld [vmem:[%s1 + $0xd8] sm:$0xff]
    %v300 = vld [vmem:[%s1 + $0xe0] sm:$0xff]
    %v301 = vld [vmem:[%s1 + $0xe8] sm:$0xff]
    %v302 = vld [vmem:[%s2] sm:$0x3]
    %v304 = vperm.slane %v302, 0
    %v305 = vperm.slane %v302, 1
    %vm308 = vcmask 982016
    %v310 = vsel %vm308, %v271, 0
    %312 = vmatpush.msra.mxu0 0.0
    %313 = vmatpush.msra.mxu0 %v300
    %314 = vmatpush.msra.mxu0 %v298
    %315 = vmatpush.msra.mxu0 %v296
    %316 = vmatpush.msra.mxu0 %v294
    %317 = vmatpush.msra.mxu0 %v292
    %318 = vmatpush.msra.mxu0 %v290
    %319 = vmatpush.msra.mxu0 %v288
    %320 = vmatpush.msra.mxu0 %v286
    %321 = vmatpush.msra.mxu0 %v284
    %322 = vmatpush.msra.mxu0 %v282
    %323 = vmatpush.msra.mxu0 %v280
    %324 = vmatpush.msra.mxu0 %v278
    %325 = vmatpush.msra.mxu0 %v276
    %326 = vmatpush.msra.mxu0 %v274
    %327 = vmatpush.msra.mxu0 %v272
    %328 = vmatmul.f32.gmra.mxu0 %v310
    %v329 = vpop.f32.mrf.mxu0
    %v330 = vadd.f32 %v304, %v329
    %331 = vdwg.mxu0
    %332 = vmatpush.msra.mxu0 0.0
    %333 = vmatpush.msra.mxu0 %v301
    %334 = vmatpush.msra.mxu0 %v299
    %335 = vmatpush.msra.mxu0 %v297
    %336 = vmatpush.msra.mxu0 %v295
    %337 = vmatpush.msra.mxu0 %v293
    %338 = vmatpush.msra.mxu0 %v291
    %339 = vmatpush.msra.mxu0 %v289
    %340 = vmatpush.msra.mxu0 %v287
    %341 = vmatpush.msra.mxu0 %v285
    %342 = vmatpush.msra.mxu0 %v283
    %343 = vmatpush.msra.mxu0 %v281
    %344 = vmatpush.msra.mxu0 %v279
    %345 = vmatpush.msra.mxu0 %v277
    %346 = vmatpush.msra.mxu0 %v275
    %347 = vmatpush.msra.mxu0 %v273
    %348 = vmatmul.f32.gmra.mxu0 %v310
    %v349 = vpop.f32.mrf.mxu0
    %v350 = vadd.f32 %v305, %v349
    %351 = vdwg.mxu0
    %v352 = vmax.f32 %v330, 0.0
    %v353 = vmax.f32 %v350, 0.0
    %v354 = vld [vmem:[#allocation2] sm:$0xff]
    %v355 = vld [vmem:[#allocation2 + $0x8] sm:$0xff]
    %v356 = vld [vmem:[#allocation2 + $0x10] sm:$0xff]
    %v357 = vld [vmem:[#allocation2 + $0x18] sm:$0xff]
    %v358 = vld [vmem:[#allocation2 + $0x20] sm:$0xff]
    %v359 = vld [vmem:[#allocation2 + $0x28] sm:$0xff]
    %v360 = vld [vmem:[#allocation2 + $0x30] sm:$0xff]
    %v361 = vld [vmem:[#allocation2 + $0x38] sm:$0xff]
    %v362 = vld [vmem:[#allocation2 + $0x40] sm:$0xff]
    %v363 = vld [vmem:[#allocation2 + $0x48] sm:$0xff]
    %v364 = vld [vmem:[#allocation2 + $0x50] sm:$0xff]
    %v365 = vld [vmem:[#allocation2 + $0x58] sm:$0xff]
    %v366 = vld [vmem:[#allocation2 + $0x60] sm:$0xff]
    %v367 = vld [vmem:[#allocation2 + $0x68] sm:$0xff]
    %v368 = vld [vmem:[#allocation2 + $0x70] sm:$0xff]
    %v369 = vld [vmem:[#allocation2 + $0x78] sm:$0xff]
    %v370 = vld [vmem:[#allocation2 + $0x80] sm:$0xff]
    %v371 = vld [vmem:[#allocation2 + $0x88] sm:$0xff]
    %v372 = vld [vmem:[#allocation2 + $0x90] sm:$0xff]
    %v373 = vld [vmem:[#allocation2 + $0x98] sm:$0xff]
    %v374 = vld [vmem:[#allocation2 + $0xa0] sm:$0xff]
    %v375 = vld [vmem:[#allocation2 + $0xa8] sm:$0xff]
    %v376 = vld [vmem:[#allocation2 + $0xb0] sm:$0xff]
    %v377 = vld [vmem:[#allocation2 + $0xb8] sm:$0xff]
    %v378 = vld [vmem:[#allocation2 + $0xc0] sm:$0xff]
    %v379 = vld [vmem:[#allocation2 + $0xc8] sm:$0xff]
    %v380 = vld [vmem:[#allocation2 + $0xd0] sm:$0xff]
    %v381 = vld [vmem:[#allocation2 + $0xd8] sm:$0xff]
    %v382 = vld [vmem:[#allocation2 + $0xe0] sm:$0xff]
    %v383 = vld [vmem:[#allocation2 + $0xe8] sm:$0xff]
    %v384 = vld [vmem:[#allocation2 + $0xf0] sm:$0xff]
    %v385 = vld [vmem:[#allocation2 + $0xf8] sm:$0xff]
    %v386 = vld [vmem:[#allocation2 + $0x100] sm:$0xff]
    %v387 = vld [vmem:[#allocation2 + $0x108] sm:$0xff]
    %v388 = vld [vmem:[#allocation2 + $0x110] sm:$0xff]
    %v389 = vld [vmem:[#allocation2 + $0x118] sm:$0xff]
    %v390 = vld [vmem:[#allocation2 + $0x120] sm:$0xff]
    %v391 = vld [vmem:[#allocation2 + $0x128] sm:$0xff]
    %v392 = vld [vmem:[#allocation2 + $0x130] sm:$0xff]
    %v393 = vld [vmem:[#allocation2 + $0x138] sm:$0xff]
    %v394 = vld [vmem:[#allocation2 + $0x140] sm:$0xff]
    %v395 = vld [vmem:[#allocation2 + $0x148] sm:$0xff]
    %v396 = vld [vmem:[#allocation2 + $0x150] sm:$0xff]
    %v397 = vld [vmem:[#allocation2 + $0x158] sm:$0xff]
    %v398 = vld [vmem:[#allocation2 + $0x160] sm:$0xff]
    %v399 = vld [vmem:[#allocation2 + $0x168] sm:$0xff]
    %v400 = vld [vmem:[#allocation2 + $0x170] sm:$0xff]
    %v401 = vld [vmem:[#allocation2 + $0x178] sm:$0xff]
    %v402 = vld [vmem:[#allocation2 + $0x180] sm:$0xff]
    %v403 = vld [vmem:[#allocation2 + $0x188] sm:$0xff]
    %v404 = vld [vmem:[#allocation2 + $0x190] sm:$0xff]
    %v405 = vld [vmem:[#allocation2 + $0x198] sm:$0xff]
    %v406 = vld [vmem:[#allocation2 + $0x1a0] sm:$0xff]
    %v407 = vld [vmem:[#allocation2 + $0x1a8] sm:$0xff]
    %v408 = vld [vmem:[#allocation2 + $0x1b0] sm:$0xff]
    %v409 = vld [vmem:[#allocation2 + $0x1b8] sm:$0xff]
    %v410 = vld [vmem:[#allocation2 + $0x1c0] sm:$0xff]
    %v411 = vld [vmem:[#allocation2 + $0x1c8] sm:$0xff]
    %v412 = vld [vmem:[#allocation2 + $0x1d0] sm:$0xff]
    %v413 = vld [vmem:[#allocation2 + $0x1d8] sm:$0xff]
    %v414 = vld [vmem:[#allocation2 + $0x1e0] sm:$0xff]
    %v415 = vld [vmem:[#allocation2 + $0x1e8] sm:$0xff]
    %v416 = vld [vmem:[#allocation2 + $0x1f0] sm:$0xff]
    %v417 = vld [vmem:[#allocation2 + $0x1f8] sm:$0xff]
    %v418 = vld [vmem:[#allocation2 + $0x200] sm:$0xff]
    %v419 = vld [vmem:[#allocation2 + $0x208] sm:$0xff]
    %v420 = vld [vmem:[#allocation2 + $0x210] sm:$0xff]
    %v421 = vld [vmem:[#allocation2 + $0x218] sm:$0xff]
    %v422 = vld [vmem:[#allocation2 + $0x220] sm:$0xff]
    %v423 = vld [vmem:[#allocation2 + $0x228] sm:$0x3f]
    %v424 = vld [vmem:[#allocation2 + $0x230] sm:$0x3f]
    %v425 = vld [vmem:[#allocation2 + $0x238] sm:$0x3f]
    %v426 = vld [vmem:[%s4] sm:$0x7]
    %v428 = vperm.slane %v426, 0
    %v429 = vperm.slane %v426, 1
    %v430 = vperm.slane %v426, 2
    %vm434 = vcmask 506880
    %v436 = vsel %vm434, %v353, 0
    %vm438 = vcmask 1045504
    %v440 = vsel %vm438, %v423, 0
    %v443 = vsel %vm438, %v424, 0
    %v446 = vsel %vm438, %v425, 0
    %448 = vmatpush.msra.mxu0 %v399
    %449 = vmatpush.msra.mxu0 %v396
    %450 = vmatpush.msra.mxu0 %v393
    %451 = vmatpush.msra.mxu0 %v390
    %452 = vmatpush.msra.mxu0 %v387
    %453 = vmatpush.msra.mxu0 %v384
    %454 = vmatpush.msra.mxu0 %v381
    %455 = vmatpush.msra.mxu0 %v378
    %456 = vmatpush.msra.mxu0 %v375
    %457 = vmatpush.msra.mxu0 %v372
    %458 = vmatpush.msra.mxu0 %v369
    %459 = vmatpush.msra.mxu0 %v366
    %460 = vmatpush.msra.mxu0 %v363
    %461 = vmatpush.msra.mxu0 %v360
    %462 = vmatpush.msra.mxu0 %v357
    %463 = vmatpush.msra.mxu0 %v354
    %464 = vmatmul.f32.gmra.mxu0 %v352
    %v465 = vpop.f32.mrf.mxu0
    %v466 = vadd.f32 %v428, %v465
    %467 = vdwg.mxu0
    %468 = vmatpush.msra.mxu0 0.0
    %469 = vmatpush.msra.mxu0 0.0
    %470 = vmatpush.msra.mxu0 0.0
    %471 = vmatpush.msra.mxu0 0.0
    %472 = vmatpush.msra.mxu0 0.0
    %473 = vmatpush.msra.mxu0 0.0
    %474 = vmatpush.msra.mxu0 0.0
    %475 = vmatpush.msra.mxu0 0.0
    %476 = vmatpush.msra.mxu0 %v440
    %477 = vmatpush.msra.mxu0 %v420
    %478 = vmatpush.msra.mxu0 %v417
    %479 = vmatpush.msra.mxu0 %v414
    %480 = vmatpush.msra.mxu0 %v411
    %481 = vmatpush.msra.mxu0 %v408
    %482 = vmatpush.msra.mxu0 %v405
    %483 = vmatpush.msra.mxu0 %v402
    %484 = vmatmul.f32.gmra.mxu0 %v436
    %v485 = vpop.f32.mrf.mxu0
    %v486 = vadd.f32 %v466, %v485
    %487 = vdwg.mxu0
    %488 = vmatpush.msra.mxu0 %v400
    %489 = vmatpush.msra.mxu0 %v397
    %490 = vmatpush.msra.mxu0 %v394
    %491 = vmatpush.msra.mxu0 %v391
    %492 = vmatpush.msra.mxu0 %v388
    %493 = vmatpush.msra.mxu0 %v385
    %494 = vmatpush.msra.mxu0 %v382
    %495 = vmatpush.msra.mxu0 %v379
    %496 = vmatpush.msra.mxu0 %v376
    %497 = vmatpush.msra.mxu0 %v373
    %498 = vmatpush.msra.mxu0 %v370
    %499 = vmatpush.msra.mxu0 %v367
    %500 = vmatpush.msra.mxu0 %v364
    %501 = vmatpush.msra.mxu0 %v361
    %502 = vmatpush.msra.mxu0 %v358
    %503 = vmatpush.msra.mxu0 %v355
    %504 = vmatmul.f32.gmra.mxu0 %v352
    %v505 = vpop.f32.mrf.mxu0
    %v506 = vadd.f32 %v429, %v505
    %507 = vdwg.mxu0
    %508 = vmatpush.msra.mxu0 0.0
    %509 = vmatpush.msra.mxu0 0.0
    %510 = vmatpush.msra.mxu0 0.0
    %511 = vmatpush.msra.mxu0 0.0
    %512 = vmatpush.msra.mxu0 0.0
    %513 = vmatpush.msra.mxu0 0.0
    %514 = vmatpush.msra.mxu0 0.0
    %515 = vmatpush.msra.mxu0 0.0
    %516 = vmatpush.msra.mxu0 %v443
    %517 = vmatpush.msra.mxu0 %v421
    %518 = vmatpush.msra.mxu0 %v418
    %519 = vmatpush.msra.mxu0 %v415
    %520 = vmatpush.msra.mxu0 %v412
    %521 = vmatpush.msra.mxu0 %v409
    %522 = vmatpush.msra.mxu0 %v406
    %523 = vmatpush.msra.mxu0 %v403
    %524 = vmatmul.f32.gmra.mxu0 %v436
    %v525 = vpop.f32.mrf.mxu0
    %v526 = vadd.f32 %v506, %v525
    %527 = vdwg.mxu0
    %528 = vmatpush.msra.mxu0 %v401
    %529 = vmatpush.msra.mxu0 %v398
    %530 = vmatpush.msra.mxu0 %v395
    %531 = vmatpush.msra.mxu0 %v392
    %532 = vmatpush.msra.mxu0 %v389
    %533 = vmatpush.msra.mxu0 %v386
    %534 = vmatpush.msra.mxu0 %v383
    %535 = vmatpush.msra.mxu0 %v380
    %536 = vmatpush.msra.mxu0 %v377
    %537 = vmatpush.msra.mxu0 %v374
    %538 = vmatpush.msra.mxu0 %v371
    %539 = vmatpush.msra.mxu0 %v368
    %540 = vmatpush.msra.mxu0 %v365
    %541 = vmatpush.msra.mxu0 %v362
    %542 = vmatpush.msra.mxu0 %v359
    %543 = vmatpush.msra.mxu0 %v356
    %544 = vmatmul.f32.gmra.mxu0 %v352
    %v545 = vpop.f32.mrf.mxu0
    %v546 = vadd.f32 %v430, %v545
    %547 = vdwg.mxu0
    %548 = vmatpush.msra.mxu0 0.0
    %549 = vmatpush.msra.mxu0 0.0
    %550 = vmatpush.msra.mxu0 0.0
    %551 = vmatpush.msra.mxu0 0.0
    %552 = vmatpush.msra.mxu0 0.0
    %553 = vmatpush.msra.mxu0 0.0
    %554 = vmatpush.msra.mxu0 0.0
    %555 = vmatpush.msra.mxu0 0.0
    %556 = vmatpush.msra.mxu0 %v446
    %557 = vmatpush.msra.mxu0 %v422
    %558 = vmatpush.msra.mxu0 %v419
    %559 = vmatpush.msra.mxu0 %v416
    %560 = vmatpush.msra.mxu0 %v413
    %561 = vmatpush.msra.mxu0 %v410
    %562 = vmatpush.msra.mxu0 %v407
    %563 = vmatpush.msra.mxu0 %v404
    %564 = vmatmul.f32.gmra.mxu0 %v436
    %v565 = vpop.f32.mrf.mxu0
    %v566 = vadd.f32 %v546, %v565
    %567 = vdwg.mxu0
    %v568 = vmax.f32 %v486, 0.0
    %v569 = vmax.f32 %v526, 0.0
    %v570 = vmax.f32 %v566, 0.0
    %v571 = vld [vmem:[%s5] sm:$0xff]
    %v572 = vld [vmem:[%s5 + $0x8] sm:$0xff]
    %v573 = vld [vmem:[%s5 + $0x10] sm:$0xff]
    %v574 = vld [vmem:[%s5 + $0x18] sm:$0xff]
    %v575 = vld [vmem:[%s5 + $0x20] sm:$0xff]
    %v576 = vld [vmem:[%s5 + $0x28] sm:$0xff]
    %v577 = vld [vmem:[%s5 + $0x30] sm:$0xff]
    %v578 = vld [vmem:[%s5 + $0x38] sm:$0xff]
    %v579 = vld [vmem:[%s5 + $0x40] sm:$0xff]
    %v580 = vld [vmem:[%s5 + $0x48] sm:$0xff]
    %v581 = vld [vmem:[%s5 + $0x50] sm:$0xff]
    %v582 = vld [vmem:[%s5 + $0x58] sm:$0xff]
    %v583 = vld [vmem:[%s5 + $0x60] sm:$0xff]
    %v584 = vld [vmem:[%s5 + $0x68] sm:$0xff]
    %v585 = vld [vmem:[%s5 + $0x70] sm:$0xff]
    %v586 = vld [vmem:[%s5 + $0x78] sm:$0xff]
    %v587 = vld [vmem:[%s5 + $0x80] sm:$0xff]
    %v588 = vld [vmem:[%s5 + $0x88] sm:$0xff]
    %v589 = vld [vmem:[%s5 + $0x90] sm:$0xff]
    %v590 = vld [vmem:[%s5 + $0x98] sm:$0xff]
    %v591 = vld [vmem:[%s5 + $0xa0] sm:$0xff]
    %v592 = vld [vmem:[%s5 + $0xa8] sm:$0xff]
    %v593 = vld [vmem:[%s5 + $0xb0] sm:$0xff]
    %v594 = vld [vmem:[%s5 + $0xb8] sm:$0xff]
    %v595 = vld [vmem:[%s5 + $0xc0] sm:$0xff]
    %v596 = vld [vmem:[%s5 + $0xc8] sm:$0xff]
    %v597 = vld [vmem:[%s5 + $0xd0] sm:$0xff]
    %v598 = vld [vmem:[%s5 + $0xd8] sm:$0xff]
    %v599 = vld [vmem:[%s5 + $0xe0] sm:$0xff]
    %v600 = vld [vmem:[%s5 + $0xe8] sm:$0xff]
    %v601 = vld [vmem:[%s5 + $0xf0] sm:$0xff]
    %v602 = vld [vmem:[%s5 + $0xf8] sm:$0xff]
    %v603 = vld [vmem:[%s5 + $0x100] sm:$0xff]
    %v604 = vld [vmem:[%s5 + $0x108] sm:$0xff]
    %v605 = vld [vmem:[%s5 + $0x110] sm:$0xff]
    %v606 = vld [vmem:[%s5 + $0x118] sm:$0xff]
    %v607 = vld [vmem:[%s5 + $0x120] sm:$0xff]
    %v608 = vld [vmem:[%s5 + $0x128] sm:$0xff]
    %v609 = vld [vmem:[%s5 + $0x130] sm:$0xff]
    %v610 = vld [vmem:[%s5 + $0x138] sm:$0xff]
    %v611 = vld [vmem:[%s5 + $0x140] sm:$0xff]
    %v612 = vld [vmem:[%s5 + $0x148] sm:$0xff]
    %v613 = vld [vmem:[%s5 + $0x150] sm:$0xff]
    %v614 = vld [vmem:[%s5 + $0x158] sm:$0xff]
    %v615 = vld [vmem:[%s5 + $0x160] sm:$0xff]
    %v616 = vld [vmem:[%s5 + $0x168] sm:$0xff]
    %v617 = vld [vmem:[%s5 + $0x170] sm:$0xff]
    %v618 = vld [vmem:[%s5 + $0x178] sm:$0xff]
    %v619 = vld [vmem:[%s5 + $0x180] sm:$0xff]
    %v620 = vld [vmem:[%s5 + $0x188] sm:$0xff]
    %v621 = vld [vmem:[%s5 + $0x190] sm:$0xff]
    %v622 = vld [vmem:[%s5 + $0x198] sm:$0xff]
    %v623 = vld [vmem:[%s5 + $0x1a0] sm:$0xff]
    %v624 = vld [vmem:[%s5 + $0x1a8] sm:$0xff]
    %v625 = vld [vmem:[%s5 + $0x1b0] sm:$0xff]
    %v626 = vld [vmem:[%s5 + $0x1b8] sm:$0xff]
    %v627 = vld [vmem:[%s5 + $0x1c0] sm:$0xff]
    %v628 = vld [vmem:[%s5 + $0x1c8] sm:$0xff]
    %v629 = vld [vmem:[%s5 + $0x1d0] sm:$0xff]
    %v630 = vld [vmem:[%s5 + $0x1d8] sm:$0xff]
    %v631 = vld [vmem:[%s5 + $0x1e0] sm:$0xff]
    %v632 = vld [vmem:[%s5 + $0x1e8] sm:$0xff]
    %v633 = vld [vmem:[%s5 + $0x1f0] sm:$0xff]
    %v634 = vld [vmem:[%s5 + $0x1f8] sm:$0xff]
    %v635 = vld [vmem:[%s5 + $0x200] sm:$0xff]
    %v636 = vld [vmem:[%s5 + $0x208] sm:$0xff]
    %v637 = vld [vmem:[%s5 + $0x210] sm:$0xff]
    %v638 = vld [vmem:[%s5 + $0x218] sm:$0xff]
    %v639 = vld [vmem:[%s5 + $0x220] sm:$0xff]
    %v640 = vld [vmem:[%s5 + $0x228] sm:$0xff]
    %v641 = vld [vmem:[%s5 + $0x230] sm:$0xff]
    %v642 = vld [vmem:[%s5 + $0x238] sm:$0xff]
    %v643 = vld [vmem:[%s5 + $0x240] sm:$0xff]
    %v644 = vld [vmem:[%s5 + $0x248] sm:$0xff]
    %v645 = vld [vmem:[%s5 + $0x250] sm:$0xff]
    %v646 = vld [vmem:[%s5 + $0x258] sm:$0xff]
    %v647 = vld [vmem:[%s5 + $0x260] sm:$0xff]
    %v648 = vld [vmem:[%s5 + $0x268] sm:$0xff]
    %v649 = vld [vmem:[%s5 + $0x270] sm:$0xff]
    %v650 = vld [vmem:[%s5 + $0x278] sm:$0xff]
    %v651 = vld [vmem:[%s5 + $0x280] sm:$0xff]
    %v652 = vld [vmem:[%s5 + $0x288] sm:$0xff]
    %v653 = vld [vmem:[%s5 + $0x290] sm:$0xff]
    %v654 = vld [vmem:[%s5 + $0x298] sm:$0xff]
    %v655 = vld [vmem:[%s5 + $0x2a0] sm:$0xff]
    %v656 = vld [vmem:[%s5 + $0x2a8] sm:$0xff]
    %v657 = vld [vmem:[%s5 + $0x2b0] sm:$0xff]
    %v658 = vld [vmem:[%s5 + $0x2b8] sm:$0xff]
    %v659 = vld [vmem:[%s5 + $0x2c0] sm:$0xff]
    %v660 = vld [vmem:[%s5 + $0x2c8] sm:$0xff]
    %v661 = vld [vmem:[%s6] sm:$0x3]
    %v663 = vperm.slane %v661, 0
    %v664 = vperm.slane %v661, 1
    %v668 = vsel %vm111, %v570, 0
    %670 = vmatpush.msra.mxu0 %v601
    %671 = vmatpush.msra.mxu0 %v599
    %672 = vmatpush.msra.mxu0 %v597
    %673 = vmatpush.msra.mxu0 %v595
    %674 = vmatpush.msra.mxu0 %v593
    %675 = vmatpush.msra.mxu0 %v591
    %676 = vmatpush.msra.mxu0 %v589
    %677 = vmatpush.msra.mxu0 %v587
    %678 = vmatpush.msra.mxu0 %v585
    %679 = vmatpush.msra.mxu0 %v583
    %680 = vmatpush.msra.mxu0 %v581
    %681 = vmatpush.msra.mxu0 %v579
    %682 = vmatpush.msra.mxu0 %v577
    %683 = vmatpush.msra.mxu0 %v575
    %684 = vmatpush.msra.mxu0 %v573
    %685 = vmatpush.msra.mxu0 %v571
    %686 = vmatmul.f32.gmra.mxu0 %v568
    %v687 = vpop.f32.mrf.mxu0
    %v688 = vadd.f32 %v663, %v687
    %689 = vdwg.mxu0
    %690 = vmatpush.msra.mxu0 %v633
    %691 = vmatpush.msra.mxu0 %v631
    %692 = vmatpush.msra.mxu0 %v629
    %693 = vmatpush.msra.mxu0 %v627
    %694 = vmatpush.msra.mxu0 %v625
    %695 = vmatpush.msra.mxu0 %v623
    %696 = vmatpush.msra.mxu0 %v621
    %697 = vmatpush.msra.mxu0 %v619
    %698 = vmatpush.msra.mxu0 %v617
    %699 = vmatpush.msra.mxu0 %v615
    %700 = vmatpush.msra.mxu0 %v613
    %701 = vmatpush.msra.mxu0 %v611
    %702 = vmatpush.msra.mxu0 %v609
    %703 = vmatpush.msra.mxu0 %v607
    %704 = vmatpush.msra.mxu0 %v605
    %705 = vmatpush.msra.mxu0 %v603
    %706 = vmatmul.f32.gmra.mxu0 %v569
    %v707 = vpop.f32.mrf.mxu0
    %v708 = vadd.f32 %v688, %v707
    %709 = vdwg.mxu0
    %710 = vmatpush.msra.mxu0 0.0
    %711 = vmatpush.msra.mxu0 0.0
    %712 = vmatpush.msra.mxu0 0.0
    %713 = vmatpush.msra.mxu0 %v659
    %714 = vmatpush.msra.mxu0 %v657
    %715 = vmatpush.msra.mxu0 %v655
    %716 = vmatpush.msra.mxu0 %v653
    %717 = vmatpush.msra.mxu0 %v651
    %718 = vmatpush.msra.mxu0 %v649
    %719 = vmatpush.msra.mxu0 %v647
    %720 = vmatpush.msra.mxu0 %v645
    %721 = vmatpush.msra.mxu0 %v643
    %722 = vmatpush.msra.mxu0 %v641
    %723 = vmatpush.msra.mxu0 %v639
    %724 = vmatpush.msra.mxu0 %v637
    %725 = vmatpush.msra.mxu0 %v635
    %726 = vmatmul.f32.gmra.mxu0 %v668
    %v727 = vpop.f32.mrf.mxu0
    %v728 = vadd.f32 %v708, %v727
    %729 = vdwg.mxu0
    %730 = vmatpush.msra.mxu0 %v602
    %731 = vmatpush.msra.mxu0 %v600
    %732 = vmatpush.msra.mxu0 %v598
    %733 = vmatpush.msra.mxu0 %v596
    %734 = vmatpush.msra.mxu0 %v594
    %735 = vmatpush.msra.mxu0 %v592
    %736 = vmatpush.msra.mxu0 %v590
    %737 = vmatpush.msra.mxu0 %v588
    %738 = vmatpush.msra.mxu0 %v586
    %739 = vmatpush.msra.mxu0 %v584
    %740 = vmatpush.msra.mxu0 %v582
    %741 = vmatpush.msra.mxu0 %v580
    %742 = vmatpush.msra.mxu0 %v578
    %743 = vmatpush.msra.mxu0 %v576
    %744 = vmatpush.msra.mxu0 %v574
    %745 = vmatpush.msra.mxu0 %v572
    %746 = vmatmul.f32.gmra.mxu0 %v568
    %v747 = vpop.f32.mrf.mxu0
    %v748 = vadd.f32 %v664, %v747
    %749 = vdwg.mxu0
    %750 = vmatpush.msra.mxu0 %v634
    %751 = vmatpush.msra.mxu0 %v632
    %752 = vmatpush.msra.mxu0 %v630
    %753 = vmatpush.msra.mxu0 %v628
    %754 = vmatpush.msra.mxu0 %v626
    %755 = vmatpush.msra.mxu0 %v624
    %756 = vmatpush.msra.mxu0 %v622
    %757 = vmatpush.msra.mxu0 %v620
    %758 = vmatpush.msra.mxu0 %v618
    %759 = vmatpush.msra.mxu0 %v616
    %760 = vmatpush.msra.mxu0 %v614
    %761 = vmatpush.msra.mxu0 %v612
    %762 = vmatpush.msra.mxu0 %v610
    %763 = vmatpush.msra.mxu0 %v608
    %764 = vmatpush.msra.mxu0 %v606
    %765 = vmatpush.msra.mxu0 %v604
    %766 = vmatmul.f32.gmra.mxu0 %v569
    %v767 = vpop.f32.mrf.mxu0
    %v768 = vadd.f32 %v748, %v767
    %769 = vdwg.mxu0
    %770 = vmatpush.msra.mxu0 0.0
    %771 = vmatpush.msra.mxu0 0.0
    %772 = vmatpush.msra.mxu0 0.0
    %773 = vmatpush.msra.mxu0 %v660
    %774 = vmatpush.msra.mxu0 %v658
    %775 = vmatpush.msra.mxu0 %v656
    %776 = vmatpush.msra.mxu0 %v654
    %777 = vmatpush.msra.mxu0 %v652
    %778 = vmatpush.msra.mxu0 %v650
    %779 = vmatpush.msra.mxu0 %v648
    %780 = vmatpush.msra.mxu0 %v646
    %781 = vmatpush.msra.mxu0 %v644
    %782 = vmatpush.msra.mxu0 %v642
    %783 = vmatpush.msra.mxu0 %v640
    %784 = vmatpush.msra.mxu0 %v638
    %785 = vmatpush.msra.mxu0 %v636
    %786 = vmatmul.f32.gmra.mxu0 %v668
    %v787 = vpop.f32.mrf.mxu0
    %v788 = vadd.f32 %v768, %v787
    %789 = vdwg.mxu0
    %v790 = vmax.f32 %v728, 0.0
    %v791 = vmax.f32 %v788, 0.0
    %v792 = vld [vmem:[%s7] sm:$0xff]
    %v793 = vld [vmem:[%s7 + $0x8] sm:$0xff]
    %v794 = vld [vmem:[%s7 + $0x10] sm:$0xff]
    %v795 = vld [vmem:[%s7 + $0x18] sm:$0xff]
    %v796 = vld [vmem:[%s7 + $0x20] sm:$0xff]
    %v797 = vld [vmem:[%s7 + $0x28] sm:$0xff]
    %v798 = vld [vmem:[%s7 + $0x30] sm:$0xff]
    %v799 = vld [vmem:[%s7 + $0x38] sm:$0xff]
    %v800 = vld [vmem:[%s7 + $0x40] sm:$0xff]
    %v801 = vld [vmem:[%s7 + $0x48] sm:$0xff]
    %v802 = vld [vmem:[%s7 + $0x50] sm:$0xff]
    %v803 = vld [vmem:[%s7 + $0x58] sm:$0xff]
    %v804 = vld [vmem:[%s7 + $0x60] sm:$0xff]
    %v805 = vld [vmem:[%s7 + $0x68] sm:$0xff]
    %v806 = vld [vmem:[%s7 + $0x70] sm:$0xff]
    %v807 = vld [vmem:[%s7 + $0x78] sm:$0xff]
    %v808 = vld [vmem:[%s7 + $0x80] sm:$0xff]
    %v809 = vld [vmem:[%s7 + $0x88] sm:$0xff]
    %v810 = vld [vmem:[%s7 + $0x90] sm:$0xff]
    %v811 = vld [vmem:[%s7 + $0x98] sm:$0xff]
    %v812 = vld [vmem:[%s7 + $0xa0] sm:$0xff]
    %v813 = vld [vmem:[%s7 + $0xa8] sm:$0xff]
    %v814 = vld [vmem:[%s7 + $0xb0] sm:$0xff]
    %v815 = vld [vmem:[%s7 + $0xb8] sm:$0xff]
    %v816 = vld [vmem:[%s7 + $0xc0] sm:$0xff]
    %v817 = vld [vmem:[%s7 + $0xc8] sm:$0xff]
    %v818 = vld [vmem:[%s7 + $0xd0] sm:$0xff]
    %v819 = vld [vmem:[%s7 + $0xd8] sm:$0xff]
    %v820 = vld [vmem:[%s7 + $0xe0] sm:$0xff]
    %v821 = vld [vmem:[%s7 + $0xe8] sm:$0xff]
    %v822 = vld [vmem:[%s7 + $0xf0] sm:$0xff]
    %v823 = vld [vmem:[%s7 + $0xf8] sm:$0xff]
    %v824 = vld [vmem:[%s8] sm:$0x1]
    %v826 = vperm.slane %v824, 0
    %828 = vmatpush.msra.mxu0 %v807
    %829 = vmatpush.msra.mxu0 %v806
    %830 = vmatpush.msra.mxu0 %v805
    %831 = vmatpush.msra.mxu0 %v804
    %832 = vmatpush.msra.mxu0 %v803
    %833 = vmatpush.msra.mxu0 %v802
    %834 = vmatpush.msra.mxu0 %v801
    %835 = vmatpush.msra.mxu0 %v800
    %836 = vmatpush.msra.mxu0 %v799
    %837 = vmatpush.msra.mxu0 %v798
    %838 = vmatpush.msra.mxu0 %v797
    %839 = vmatpush.msra.mxu0 %v796
    %840 = vmatpush.msra.mxu0 %v795
    %841 = vmatpush.msra.mxu0 %v794
    %842 = vmatpush.msra.mxu0 %v793
    %843 = vmatpush.msra.mxu0 %v792
    %844 = vmatmul.f32.gmra.mxu0 %v790
    %v845 = vpop.f32.mrf.mxu0
    %v846 = vadd.f32 %v826, %v845
    %847 = vdwg.mxu0
    %848 = vmatpush.msra.mxu0 %v823
    %849 = vmatpush.msra.mxu0 %v822
    %850 = vmatpush.msra.mxu0 %v821
    %851 = vmatpush.msra.mxu0 %v820
    %852 = vmatpush.msra.mxu0 %v819
    %853 = vmatpush.msra.mxu0 %v818
    %854 = vmatpush.msra.mxu0 %v817
    %855 = vmatpush.msra.mxu0 %v816
    %856 = vmatpush.msra.mxu0 %v815
    %857 = vmatpush.msra.mxu0 %v814
    %858 = vmatpush.msra.mxu0 %v813
    %859 = vmatpush.msra.mxu0 %v812
    %860 = vmatpush.msra.mxu0 %v811
    %861 = vmatpush.msra.mxu0 %v810
    %862 = vmatpush.msra.mxu0 %v809
    %863 = vmatpush.msra.mxu0 %v808
    %864 = vmatmul.f32.gmra.mxu0 %v791
    %v865 = vpop.f32.mrf.mxu0
    %v866 = vadd.f32 %v846, %v865
    %867 = vdwg.mxu0
    %v868 = vmax.f32 %v866, 0.0
    %v869 = vld [vmem:[%s9] sm:$0xff]
    %v870 = vld [vmem:[%s9 + $0x8] sm:$0xff]
    %v871 = vld [vmem:[%s9 + $0x10] sm:$0xff]
    %v872 = vld [vmem:[%s9 + $0x18] sm:$0xff]
    %v873 = vld [vmem:[%s9 + $0x20] sm:$0xff]
    %v874 = vld [vmem:[%s9 + $0x28] sm:$0xff]
    %v875 = vld [vmem:[%s9 + $0x30] sm:$0xff]
    %v876 = vld [vmem:[%s9 + $0x38] sm:$0xff]
    %v877 = vld [vmem:[%s10] sm:$0x1]
    %v879 = vperm.slane %v877, 0
    %vm881 = vcmask 523264
    %v883 = vsel %vm881, %v868, 0
    %885 = vmatpush.msra.mxu0 0.0
    %886 = vmatpush.msra.mxu0 0.0
    %887 = vmatpush.msra.mxu0 0.0
    %888 = vmatpush.msra.mxu0 0.0
    %889 = vmatpush.msra.mxu0 0.0
    %890 = vmatpush.msra.mxu0 0.0
    %891 = vmatpush.msra.mxu0 0.0
    %892 = vmatpush.msra.mxu0 0.0
    %893 = vmatpush.msra.mxu0 %v876
    %894 = vmatpush.msra.mxu0 %v875
    %895 = vmatpush.msra.mxu0 %v874
    %896 = vmatpush.msra.mxu0 %v873
    %897 = vmatpush.msra.mxu0 %v872
    %898 = vmatpush.msra.mxu0 %v871
    %899 = vmatpush.msra.mxu0 %v870
    %900 = vmatpush.msra.mxu0 %v869
    %901 = vmatmul.f32.gmra.mxu0 %v883
    %v902 = vpop.f32.mrf.mxu0
    %v903 = vadd.f32 %v879, %v902
    %904 = vdwg.mxu0
    %vm905 = vcmask 97280
    %v906 = vsel %vm905, %v903, -inf
    %907 = vmax.xlane.f32.xlu0 %v906
    %v908 = vpop.xlane.xlu0 %907
    %v909 = vsub.f32 %v903, %v908
    %v910 = vmul.f32 %v909, 1.442695
    %v911 = vpow.pop %v910
    %v912 = vsel %vm905, %v911, 0.0
    %913 = vadd.xlane.f32.xlu0 %v912
    %v914 = vpop.xlane.xlu0 %913
    %v915 = vlog2.pop %v914
    %v916 = vmul.f32 %v915, 0.6931472
    %v917 = vsub.f32 %v909, %v916
    %918 = vst.msk [vmem:[#allocation5] sm:$0xff] %vm905, %v917
    // Predicated region
    $region50: #{tpu_custom_call.1} parent=1 // pred_check
      _
    $region51: #{tpu_custom_call.1} parent=1 // pred_check_branch
      %920 = sbr.rel (0) target = $region53
    $region52: #{tpu_custom_call.1} parent=1 // pred_region
      %922 = vsyncadd [#allocation4], 0
      %s924 = sshll.u32 [#allocation5], 4
      %s925 = int_to_ptr.vmem [resolvable:$true] %s924
      %s926 = sshll.u32 %s11, 4
      %s927 = int_to_ptr.hbm [resolvable:$true] %s926
      %929 = dma.vmem_to_hbm [thread:$0]  %s925, 128, %s927, [#allocation4]
    $region53: #{tpu_custom_call.1} parent=1 // pred_fallthru
      _
    // Predicated region
    $region54: #{tpu_custom_call.1} parent=1 // pred_check
      _
    $region55: #{tpu_custom_call.1} parent=1 // pred_check_branch
      %931 = sbr.rel (0) target = $region57
    $region56: #{tpu_custom_call.1} parent=1 // pred_region
      %933 = dma.done [#allocation4], 128
    $region57: #{tpu_custom_call.1} parent=1 // pred_fallthru
      _
    %934 = vsyncpa [#allocation3], 1
    %935 = vsyncpa [#allocation4], 1

</llo_original>
